<compile_context>
chip_gen: v5e
topology: v5e:2x2
jax: 0.10.0
libtpu: 0.0.40
codegen_flags: <defaults>
</compile_context>

<pallas_src>
import math
from functools import partial

import jax
import jax.numpy as jnp
from jax.experimental import pallas as pl
from jax.experimental.pallas import tpu as pltpu


# ---------------------------------------------------------------------------
# Kernel
# ---------------------------------------------------------------------------
def _token_embedding_kernel(x_ref, prev_ref, next_ref, w_ref, o_ref):
    """One (tile_l, d_model) output tile of the circular conv1d.

    x_ref    : (tile_l, c_in)      current sequence tile
    prev_ref : (n_tiles, c_in)     halo row x[(tile_start - 1) % L] per tile
    next_ref : (n_tiles, c_in)     halo row x[tile_end % L]         per tile
    w_ref    : (3*c_in, d_model)   stacked taps: rows [0:c)=tap0, [c:2c)=tap1,
                                   [2c:3c)=tap2 (tap k multiplies shift k-1)
    o_ref    : (tile_l, d_model)
    """
    i = pl.program_id(1)
    tile_l, c_in = x_ref.shape

    x_cur = x_ref[...]                              # (tile_l, c_in)
    prev_row = prev_ref[pl.ds(i, 1), :]             # (1, c_in)
    next_row = next_ref[pl.ds(i, 1), :]             # (1, c_in)

    if tile_l % 8 == 0:
        # Sublane rotate on the XLU (free slot here) + one-row VPU select to
        # patch in the circular boundary row.
        row = jax.lax.broadcasted_iota(jnp.int32, (tile_l, c_in), 0)
        x_m1 = jnp.where(row == 0, prev_row,
                         pltpu.roll(x_cur, 1, axis=0))
        x_p1 = jnp.where(row == tile_l - 1, next_row,
                         pltpu.roll(x_cur, tile_l - 1, axis=0))
    else:
        # Rare non-8-aligned case (single full-sequence block): plain shift.
        x_m1 = jnp.concatenate([prev_row, x_cur[:-1, :]], axis=0)
        x_p1 = jnp.concatenate([x_cur[1:, :], next_row], axis=0)

    # Single fused MXU matmul over all three taps.
    lhs = jnp.concatenate([x_m1, x_cur, x_p1], axis=1)   # (tile_l, 3*c_in)
    o_ref[...] = jnp.dot(lhs, w_ref[...],
                         preferred_element_type=jnp.float32).astype(o_ref.dtype)


# ---------------------------------------------------------------------------
# Tiling / VMEM heuristics
# ---------------------------------------------------------------------------
_OUT_BLOCK_BYTES = 4 * 1024 * 1024   # per output block (double-buffered); v7x-safe


def _choose_tile(seq_len: int, d_model: int, batch: int,
                 max_tile_rows=None):
    """Returns (tile_l, needs_pad).

    Prefers the largest multiple-of-8 tile that divides seq_len so neither
    the circular-extension gather nor the output re-slice is needed.
    """
    max_rows = max(8, _OUT_BLOCK_BYTES // max(1, d_model * 4))
    max_rows = min(max_rows, 1024)
    if max_tile_rows is not None:
        max_rows = min(max_rows, max(8, int(max_tile_rows)))

    limit = min(max_rows, seq_len)
    # Only force >=2 sequence tiles when the batch axis alone can't feed both
    # megacore TensorCores / overlap the pipeline.
    if batch == 1 and seq_len >= 16:
        limit = min(limit, seq_len // 2)

    best = 0
    t = 8
    while t <= limit:
        if seq_len % t == 0:
            best = t
        t += 8
    if best:
        return best, False

    # No dividing tile: if the whole sequence fits as one block, use it
    # (block == full dim satisfies the (8,128) rule) and avoid all padding.
    if seq_len <= max_rows:
        return seq_len, False

    # Last resort: circular extension to a multiple of an aligned tile.
    return max(8, (limit // 8) * 8), True


_VMEM_LIMIT_CACHE = []


def _vmem_limit_bytes() -> int:
    if not _VMEM_LIMIT_CACHE:
        cap = 128 * 1024 * 1024
        try:
            info = pltpu.get_tpu_info()
            cap = int(getattr(info, "vmem_capacity_bytes", cap))
        except Exception:
            pass
        # v5e/v6e (128 MiB physical) -> 64 MiB scoped; v7x (64 MiB) -> 48 MiB.
        _VMEM_LIMIT_CACHE.append(
            int(min(64 * 1024 * 1024, max(16 * 1024 * 1024, (cap * 3) // 4))))
    return _VMEM_LIMIT_CACHE[0]


# ---------------------------------------------------------------------------
# Wrapper
# ---------------------------------------------------------------------------
@partial(jax.jit, static_argnames=("max_tile_rows",))
def token_embedding(x: jax.Array, weight: jax.Array, *,
                    max_tile_rows=None) -> jax.Array:
    """TokenEmbedding forward.

    x      : (B, L, c_in)
    weight : (d_model, c_in, 3)   PyTorch Conv1d weight layout
    returns: (B, L, d_model)
    """
    B, L, c_in = x.shape
    d_model = weight.shape[0]

    tile_l, needs_pad = _choose_tile(L, d_model, B, max_tile_rows)
    n_tiles = pl.cdiv(L, tile_l)
    L_pad = n_tiles * tile_l

    # Padding path only triggers when no dividing tile exists AND the sequence
    # is too long for a single block; typical shapes skip both copies below.
    if L_pad != L:
        x_pad = jnp.take(x, jnp.arange(L_pad) % L, axis=1)
    else:
        x_pad = x

    # Per-tile circular halo rows (tiny), indexed over the *true* length L.
    prev_idx = jnp.array([(i * tile_l - 1) % L for i in range(n_tiles)],
                         dtype=jnp.int32)
    next_idx = jnp.array([((i + 1) * tile_l) % L for i in range(n_tiles)],
                         dtype=jnp.int32)
    prev_rows = jnp.take(x, prev_idx, axis=1)           # (B, n_tiles, c_in)
    next_rows = jnp.take(x, next_idx, axis=1)           # (B, n_tiles, c_in)

    # weight[o, c, k] -> stacked (3*c_in, d_model); hoisted layout work.
    w_stacked = jnp.transpose(weight, (2, 1, 0)).reshape(
        3 * c_in, d_model).astype(x.dtype)

    out = pl.pallas_call(
        _token_embedding_kernel,
        out_shape=jax.ShapeDtypeStruct((B, L_pad, d_model), x.dtype),
        grid_spec=pltpu.PrefetchScalarGridSpec(
            num_scalar_prefetch=0,
            grid=(B, n_tiles),
            in_specs=[
                pl.BlockSpec((None, tile_l, c_in), lambda b, i: (b, i, 0)),
                pl.BlockSpec((None, n_tiles, c_in), lambda b, i: (b, 0, 0)),
                pl.BlockSpec((None, n_tiles, c_in), lambda b, i: (b, 0, 0)),
                pl.BlockSpec((3 * c_in, d_model), lambda b, i: (0, 0)),
            ],
            out_specs=pl.BlockSpec((None, tile_l, d_model),
                                   lambda b, i: (b, i, 0)),
        ),
        compiler_params=pltpu.CompilerParams(
            dimension_semantics=("parallel", "parallel"),
            vmem_limit_bytes=_vmem_limit_bytes(),
        ),
    )(x_pad, prev_rows, next_rows, w_stacked)

    if L_pad != L:
        out = out[:, :L, :]
    return out


# ---------------------------------------------------------------------------
# Reference + checks
# ---------------------------------------------------------------------------
def _reference_token_embedding(x, weight):
    """Pure-JAX port of the PyTorch circular Conv1d, for verification."""
    w = jnp.transpose(weight, (2, 1, 0)).astype(jnp.float32)  # (3, c_in, dm)
    xf = x.astype(jnp.float32)
    out = (jnp.roll(xf, 1, axis=1) @ w[0] + xf @ w[1]
           + jnp.roll(xf, -1, axis=1) @ w[2])
    return out.astype(x.dtype)


if __name__ == "__main__":
    key = jax.random.PRNGKey(0)
    keys = jax.random.split(key, 8)

    def make(kx, kw, B, L, c_in, d_model):
        x = jax.random.normal(kx, (B, L, c_in), dtype=jnp.float32)
        std = math.sqrt(2.0 / (c_in * 3))   # kaiming_normal fan_in, leaky_relu
        w = std * jax.random.normal(kw, (d_model, c_in, 3), dtype=jnp.float32)
        return x, w

    def check(x, w, **kwargs):
        out = jax.block_until_ready(token_embedding(x, w, **kwargs))
        ref = _reference_token_embedding(x, w)
        assert out.shape == ref.shape, (out.shape, ref.shape)
        assert out.dtype == x.dtype, out.dtype
        err = float(jnp.max(jnp.abs(out - ref)))
        assert jnp.allclose(out, ref, atol=1e-4, rtol=1e-4), err

    # 1) Primary: B=2, L=16, c_in=4, d_model=32 -> one 16-row tile, roll path,
    #    no padding / no output slice.
    x1, w1 = make(keys[0], keys[1], 2, 16, 4, 32)
    check(x1, w1)

    # 2) Multi-tile with cross-tile circular halos: B=1, L=32 -> two 16-row
    #    tiles (B==1 keeps >=2 sequence tiles).
    x2, w2 = make(keys[2], keys[3], 1, 32, 4, 32)
    check(x2, w2)

    # 3) Length with no multiple-of-8 divisor -> single full block, concat
    #    fallback path, still no padding copies.
    x3, w3 = make(keys[4], keys[5], 1, 12, 3, 32)
    check(x3, w3)

    # 4) Forced last-resort padded path (circular extension + output slice).
    x4, w4 = make(keys[6], keys[7], 1, 13, 3, 32)
    check(x4, w4, max_tile_rows=8)

    print("KERNEL_OK")
</pallas_src>

<mosaic_0001>
module attributes {stable_mosaic.version = 11 : i64} {
  func.func @_token_embedding_kernel(%arg0: i32, %arg1: i32, %arg2: memref<1x16x4xf32, #tpu.memory_space<vmem>>, %arg3: memref<1x1x4xf32, #tpu.memory_space<vmem>>, %arg4: memref<1x1x4xf32, #tpu.memory_space<vmem>>, %arg5: memref<12x32xf32, #tpu.memory_space<vmem>>, %arg6: memref<1x16x32xf32, #tpu.memory_space<vmem>>) attributes {dimension_semantics = [#tpu.dimension_semantics<parallel>, #tpu.dimension_semantics<parallel>], iteration_bounds = array<i64: 2, 1>, scalar_prefetch = 0 : i64, scratch_operands = 0 : i64, tpu.core_type = #tpu.core_type<tc>, window_params = [{transform_indices = @transform_0, window_bounds = array<i64: 1, 16, 4>}, {transform_indices = @transform_1, window_bounds = array<i64: 1, 1, 4>}, {transform_indices = @transform_2, window_bounds = array<i64: 1, 1, 4>}, {pipeline_mode = #tpu.pipeline_mode<synchronous>, transform_indices = @transform_3, window_bounds = array<i64: 12, 32>}, {transform_indices = @transform_4, window_bounds = array<i64: 1, 16, 32>}]} {
    %c0 = arith.constant 0 : index
    %c0_0 = arith.constant 0 : index
    %c0_1 = arith.constant 0 : index
    %0 = vector.load %arg2[%c0, %c0_0, %c0_1] : memref<1x16x4xf32, #tpu.memory_space<vmem>>, vector<1x16x4xf32>
    %1 = vector.shape_cast %0 : vector<1x16x4xf32> to vector<16x4xf32>
    %c0_2 = arith.constant 0 : index
    %2 = arith.index_cast %arg1 : i32 to index
    %c0_3 = arith.constant 0 : index
    %3 = vector.load %arg3[%c0_2, %2, %c0_3] : memref<1x1x4xf32, #tpu.memory_space<vmem>>, vector<1x1x4xf32>
    %4 = vector.shape_cast %3 : vector<1x1x4xf32> to vector<1x4xf32>
    %c0_4 = arith.constant 0 : index
    %5 = arith.index_cast %arg1 : i32 to index
    %c0_5 = arith.constant 0 : index
    %6 = vector.load %arg4[%c0_4, %5, %c0_5] : memref<1x1x4xf32, #tpu.memory_space<vmem>>, vector<1x1x4xf32>
    %7 = vector.shape_cast %6 : vector<1x1x4xf32> to vector<1x4xf32>
    %8 = tpu.iota {dimensions = array<i32: 0>} : vector<16x4xi32>
    %c0_i32 = arith.constant 0 : i32
    %9 = vector.broadcast %c0_i32 : i32 to vector<16x4xi32>
    %10 = arith.cmpi eq, %8, %9 : vector<16x4xi32>
    %c1_i32 = arith.constant 1 : i32
    %11 = tpu.dynamic_rotate %1 by %c1_i32 dim 0 : vector<16x4xf32>, i32 -> vector<16x4xf32>
    %12 = vector.shape_cast %4 : vector<1x4xf32> to vector<1x4xf32>
    %13 = vector.broadcast %12 : vector<1x4xf32> to vector<16x4xf32>
    %14 = arith.select %10, %13, %11 : vector<16x4xi1>, vector<16x4xf32>
    %c15_i32 = arith.constant 15 : i32
    %15 = vector.broadcast %c15_i32 : i32 to vector<16x4xi32>
    %16 = arith.cmpi eq, %8, %15 : vector<16x4xi32>
    %c15_i32_6 = arith.constant 15 : i32
    %17 = tpu.dynamic_rotate %1 by %c15_i32_6 dim 0 : vector<16x4xf32>, i32 -> vector<16x4xf32>
    %18 = vector.shape_cast %7 : vector<1x4xf32> to vector<1x4xf32>
    %19 = vector.broadcast %18 : vector<1x4xf32> to vector<16x4xf32>
    %20 = arith.select %16, %19, %17 : vector<16x4xi1>, vector<16x4xf32>
    %21 = tpu.concatenate %14, %1, %20 in 1 : vector<16x4xf32>, vector<16x4xf32>, vector<16x4xf32> -> vector<16x12xf32>
    %c0_7 = arith.constant 0 : index
    %c0_8 = arith.constant 0 : index
    %22 = vector.load %arg5[%c0_7, %c0_8] : memref<12x32xf32, #tpu.memory_space<vmem>>, vector<12x32xf32>
    %cst = arith.constant dense<0.000000e+00> : vector<16x32xf32>
    %23 = tpu.matmul %21, %22, %cst {dimension_numbers = #tpu.dot_dimension_numbers<[1], [0], [0], [1], [0, 0, 1, 1], [], []>} : vector<16x12xf32>, vector<12x32xf32>, vector<16x32xf32> -> vector<16x32xf32>
    %c0_9 = arith.constant 0 : index
    %c0_10 = arith.constant 0 : index
    %c0_11 = arith.constant 0 : index
    %24 = vector.load %arg6[%c0_9, %c0_10, %c0_11] : memref<1x16x32xf32, #tpu.memory_space<vmem>>, vector<1x16x32xf32>
    %25 = vector.shape_cast %24 : vector<1x16x32xf32> to vector<16x32xf32>
    %26 = vector.shape_cast %23 : vector<16x32xf32> to vector<1x16x32xf32>
    tpu.vector_store %arg6[%c0_9, %c0_10, %c0_11], %26 {strides = array<i32>} : memref<1x16x32xf32, #tpu.memory_space<vmem>>, vector<1x16x32xf32>,
    return
  }
  func.func @transform_0(%arg0: i32, %arg1: i32) -> (i32, i32, i32) {
    %c0_i32 = arith.constant 0 : i32
    %c0_i32_0 = arith.constant 0 : i32
    return %arg0, %arg1, %c0_i32 : i32, i32, i32
  }
  func.func @transform_1(%arg0: i32, %arg1: i32) -> (i32, i32, i32) {
    %c0_i32 = arith.constant 0 : i32
    %c0_i32_0 = arith.constant 0 : i32
    %c0_i32_1 = arith.constant 0 : i32
    return %arg0, %c0_i32, %c0_i32_0 : i32, i32, i32
  }
  func.func @transform_2(%arg0: i32, %arg1: i32) -> (i32, i32, i32) {
    %c0_i32 = arith.constant 0 : i32
    %c0_i32_0 = arith.constant 0 : i32
    %c0_i32_1 = arith.constant 0 : i32
    return %arg0, %c0_i32, %c0_i32_0 : i32, i32, i32
  }
  func.func @transform_3(%arg0: i32, %arg1: i32) -> (i32, i32) {
    %c0_i32 = arith.constant 0 : i32
    %c0_i32_0 = arith.constant 0 : i32
    %c0_i32_1 = arith.constant 0 : i32
    return %c0_i32, %c0_i32_0 : i32, i32
  }
  func.func @transform_4(%arg0: i32, %arg1: i32) -> (i32, i32, i32) {
    %c0_i32 = arith.constant 0 : i32
    %c0_i32_0 = arith.constant 0 : i32
    return %arg0, %arg1, %c0_i32 : i32, i32, i32
  }
}

</mosaic_0001>

<llo_original>
// kernel: token_embedding.1
$region0: #{token_embedding.1}
  #allocation0 [shape = 'u32[]', space=smem, size = 0x4, offset = 0x4, fixed_abs, tag = 'smem constant byte address 0x4 - core index']
  #allocation1 [shape = 'u32[72,128]{1,0:T(1,128)}', space=vmem, size = 0x9000, scoped, tag = 'internal scratch']
  %s0 = inlined_call_operand.vmem [shape: f32[2,16,4], index: 0, kind: input, shape index: {}]
  %s1 = inlined_call_operand.vmem [shape: f32[2,1,4], index: 1, kind: input, shape index: {}]
  %s2 = inlined_call_operand.vmem [shape: f32[2,1,4], index: 2, kind: input, shape index: {}]
  %s3 = inlined_call_operand.vmem [shape: f32[12,32], index: 3, kind: input, shape index: {}]
  %s4 = inlined_call_operand.hbm [shape: f32[2,16,32], index: 4, kind: output, shape index: {}]
  %s5 = sld [smem:[#allocation0]]
  $region49: #{token_embedding.1} parent=0
    _
  %s7 = ssub.s32 1, %s5
  %s8 = scalar_select 0, %s7, %s5
  $region1: #{token_embedding.1} parent=0
    #allocation2 [shape = 'u8[16384]{0}', space=vmem, size = 0x4000, scoped, tag = 'output window, operand 0']
    #allocation3 [shape = 's32[2]{0}', space=sflag, size = 0x8, scoped, tag = 'scoped memory for token_embedding.1']
    %9 = vsyncpa [#allocation3], 0
    %s10 = scalar_lea.sflag [#allocation3], 1
    %11 = vsyncpa %s10, 0
    loop: start=0, step=1, limit=4
    $region2: #{token_embedding.1} parent=1 // loop_pre_header
      _
    $region3: #{token_embedding.1} parent=1 // loop_header
      %s13 = sphi 0, %s17
      %p14 = scmp.ge.s32.totalorder %s13, 4
      %s20 = sphi 0, %s32
      %s21 = sphi 0, %s28
      %s22 = sphi 0, %s20
      %s23 = sphi 0, %s21
      %s24 = sphi 0, %s22
      %s25 = sphi 0, %s23
      %s37 = sphi 0, %s39
      %s40 = sphi 0, %s37
      %s41 = sphi 0, %s40
      %s57 = sphi 0, %s41
      %s63 = sphi 0, %s65
      %s66 = sphi 0, %s63
      %s67 = sphi 0, %s66
      %s83 = sphi 0, %s67
      %s89 = sphi 0, %s91
      %s92 = sphi 0, %s89
      %s93 = sphi 0, %s92
      %s109 = sphi 0, %s93
      %s113 = sphi 0, %s113
      %s115 = sphi 0, %s113
      %s116 = sphi 0, %s115
      %s130 = sphi 0, %s116
      %s138 = sphi 0, %s140
      %s141 = sphi 0, %s138
      %s142 = sphi 0, %s141
      %s158 = sphi 0, %s142
    $region4: #{token_embedding.1} parent=1 // loop_header_branch
      %16 = sbr.rel (%p14) target = $region8
    $region5: #{token_embedding.1} parent=1 // loop_body
      %s18 = ssub.s32 %s13, 1
      %s19 = ssub.s32 %s13, 2
      %s26 = sadd.s32 1, %s21
      %p27 = scmp.ge.s32.totalorder %s26, 1
      %s28 = scalar_select %p27, 0, %s26
      %s29 = sadd.s32 1, %s20
      %s30 = scalar_select %p27, %s29, %s20
      %p31 = scmp.ge.s32.totalorder %s30, 2
      %s32 = scalar_select %p31, 0, %s30
      %s33 = ssub.s32 %s20, %s32
      %s34 = ssub.s32 %s21, %s28
      %s35 = sor.u32 %s33, %s34
      %p36 = scmp.eq.s32.totalorder %s35, 0
      %s38 = sadd.s32 %s37, 1
      %s39 = scalar_select %p36, %s37, %s38
      %p42 = pneg %p36
      %p43 = scmp.eq.s32.totalorder %s13, 1
      %p44 = por %p42, %p43
      %p45 = scmp.ne.s32.totalorder %s37, %s40
      %p46 = scmp.eq.s32.totalorder %s13, 0
      %p47 = por %p45, %p46
      %p48 = scmp.ne.s32.totalorder %s37, %s40
      %p49 = scmp.eq.s32.totalorder %s18, 1
      %p50 = por %p48, %p49
      %p51 = scmp.ne.s32.totalorder %s40, %s41
      %p52 = scmp.eq.s32.totalorder %s18, 0
      %p53 = por %p51, %p52
      %p54 = scmp.ne.s32.totalorder %s40, %s41
      %p55 = scmp.eq.s32.totalorder %s19, 1
      %p56 = por %p54, %p55
      %p58 = scmp.ne.s32.totalorder %s41, %s57
      %p59 = scmp.eq.s32.totalorder %s19, 0
      %p60 = por %p58, %p59
      %s61 = ssub.s32 %s20, %s32
      %p62 = scmp.eq.s32.totalorder %s61, 0
      %s64 = sadd.s32 %s63, 1
      %s65 = scalar_select %p62, %s63, %s64
      %p68 = pneg %p62
      %p69 = scmp.eq.s32.totalorder %s13, 1
      %p70 = por %p68, %p69
      %p71 = scmp.ne.s32.totalorder %s63, %s66
      %p72 = scmp.eq.s32.totalorder %s13, 0
      %p73 = por %p71, %p72
      %p74 = scmp.ne.s32.totalorder %s63, %s66
      %p75 = scmp.eq.s32.totalorder %s18, 1
      %p76 = por %p74, %p75
      %p77 = scmp.ne.s32.totalorder %s66, %s67
      %p78 = scmp.eq.s32.totalorder %s18, 0
      %p79 = por %p77, %p78
      %p80 = scmp.ne.s32.totalorder %s66, %s67
      %p81 = scmp.eq.s32.totalorder %s19, 1
      %p82 = por %p80, %p81
      %p84 = scmp.ne.s32.totalorder %s67, %s83
      %p85 = scmp.eq.s32.totalorder %s19, 0
      %p86 = por %p84, %p85
      %s87 = ssub.s32 %s20, %s32
      %p88 = scmp.eq.s32.totalorder %s87, 0
      %s90 = sadd.s32 %s89, 1
      %s91 = scalar_select %p88, %s89, %s90
      %p94 = pneg %p88
      %p95 = scmp.eq.s32.totalorder %s13, 1
      %p96 = por %p94, %p95
      %p97 = scmp.ne.s32.totalorder %s89, %s92
      %p98 = scmp.eq.s32.totalorder %s13, 0
      %p99 = por %p97, %p98
      %p100 = scmp.ne.s32.totalorder %s89, %s92
      %p101 = scmp.eq.s32.totalorder %s18, 1
      %p102 = por %p100, %p101
      %p103 = scmp.ne.s32.totalorder %s92, %s93
      %p104 = scmp.eq.s32.totalorder %s18, 0
      %p105 = por %p103, %p104
      %p106 = scmp.ne.s32.totalorder %s92, %s93
      %p107 = scmp.eq.s32.totalorder %s19, 1
      %p108 = por %p106, %p107
      %p110 = scmp.ne.s32.totalorder %s93, %s109
      %p111 = scmp.eq.s32.totalorder %s19, 0
      %p112 = por %p110, %p111
      %s114 = sadd.s32 %s113, 1
      %p117 = scmp.eq.s32.totalorder %s13, 1
      %p118 = scmp.ne.s32.totalorder %s113, %s115
      %p119 = scmp.eq.s32.totalorder %s13, 0
      %p120 = por %p118, %p119
      %p121 = scmp.ne.s32.totalorder %s113, %s115
      %p122 = scmp.eq.s32.totalorder %s18, 1
      %p123 = por %p121, %p122
      %p124 = scmp.ne.s32.totalorder %s115, %s116
      %p125 = scmp.eq.s32.totalorder %s18, 0
      %p126 = por %p124, %p125
      %p127 = scmp.ne.s32.totalorder %s115, %s116
      %p128 = scmp.eq.s32.totalorder %s19, 1
      %p129 = por %p127, %p128
      %p131 = scmp.ne.s32.totalorder %s116, %s130
      %p132 = scmp.eq.s32.totalorder %s19, 0
      %p133 = por %p131, %p132
      %s134 = ssub.s32 %s20, %s32
      %s135 = ssub.s32 %s21, %s28
      %s136 = sor.u32 %s134, %s135
      %p137 = scmp.eq.s32.totalorder %s136, 0
      %s139 = sadd.s32 %s138, 1
      %s140 = scalar_select %p137, %s138, %s139
      %p143 = pneg %p137
      %p144 = scmp.eq.s32.totalorder %s13, 1
      %p145 = por %p143, %p144
      %p146 = scmp.ne.s32.totalorder %s138, %s141
      %p147 = scmp.eq.s32.totalorder %s13, 0
      %p148 = por %p146, %p147
      %p149 = scmp.ne.s32.totalorder %s138, %s141
      %p150 = scmp.eq.s32.totalorder %s18, 1
      %p151 = por %p149, %p150
      %p152 = scmp.ne.s32.totalorder %s141, %s142
      %p153 = scmp.eq.s32.totalorder %s18, 0
      %p154 = por %p152, %p153
      %p155 = scmp.ne.s32.totalorder %s141, %s142
      %p156 = scmp.eq.s32.totalorder %s19, 1
      %p157 = por %p155, %p156
      %p159 = scmp.ne.s32.totalorder %s142, %s158
      %p160 = scmp.eq.s32.totalorder %s19, 0
      %p161 = por %p159, %p160
      %p162 = scmp.le.s32.totalorder 1, %s13
      %p163 = scmp.lt.s32.totalorder %s13, 3
      %p164 = pnand %p162, %p163
      %p165 = pneg %p164
      // Predicated region
      $region9: #{token_embedding.1} parent=5 // pred_check
        _
      $region10: #{token_embedding.1} parent=5 // pred_check_branch
        %167 = sbr.rel (%p164) target = $region12
      $region11: #{token_embedding.1} parent=5 // pred_region
        %s168 = ssub.s32 %s13, 1
        // Predicated region
        $region13: #{token_embedding.1} parent=11 // pred_check
          %p169 = pneg %p126
        $region14: #{token_embedding.1} parent=11 // pred_check_branch
          %171 = sbr.rel (%p169) target = $region16
        $region15: #{token_embedding.1} parent=11 // pred_region
          _
        $region16: #{token_embedding.1} parent=11 // pred_fallthru
          _
      $region12: #{token_embedding.1} parent=5 // pred_fallthru
        _
      %p172 = scmp.lt.s32.totalorder %s13, 2
      // Predicated region
      $region17: #{token_embedding.1} parent=5 // pred_check
        %p173 = pneg %p172
      $region18: #{token_embedding.1} parent=5 // pred_check_branch
        %175 = sbr.rel (%p173) target = $region20
      $region19: #{token_embedding.1} parent=5 // pred_region
        // Predicated region
        $region21: #{token_embedding.1} parent=19 // pred_check
          %p176 = pneg %p47
        $region22: #{token_embedding.1} parent=19 // pred_check_branch
          %178 = sbr.rel (%p176) target = $region24
        $region23: #{token_embedding.1} parent=19 // pred_region
          %s179 = smul.u32 2, %s21
          %p180 = scmp.lt.s32.totalorder %s20, 1
          %s181 = scalar_select %p180, %s20, 1
          %p182 = scmp.lt.s32.totalorder %s179, 1
          %s183 = scalar_select %p182, %s179, 1
          %s184 = smul.addr %s181, 2
          %s185 = sadd.s32 %s183, %s184
          %s186 = smul.addr %s185, 8
          %s187 = scalar_lea.vmem %s0, %s186
          %s188 = smul.u32 2, %s21
        $region24: #{token_embedding.1} parent=19 // pred_fallthru
          _
        // Predicated region
        $region25: #{token_embedding.1} parent=19 // pred_check
          %p189 = pneg %p73
        $region26: #{token_embedding.1} parent=19 // pred_check_branch
          %191 = sbr.rel (%p189) target = $region28
        $region27: #{token_embedding.1} parent=19 // pred_region
          %p192 = scmp.lt.s32.totalorder %s20, 1
          %s193 = scalar_select %p192, %s20, 1
          %s194 = scalar_lea.vmem %s1, %s193
        $region28: #{token_embedding.1} parent=19 // pred_fallthru
          _
        // Predicated region
        $region29: #{token_embedding.1} parent=19 // pred_check
          %p195 = pneg %p99
        $region30: #{token_embedding.1} parent=19 // pred_check_branch
          %197 = sbr.rel (%p195) target = $region32
        $region31: #{token_embedding.1} parent=19 // pred_region
          %p198 = scmp.lt.s32.totalorder %s20, 1
          %s199 = scalar_select %p198, %s20, 1
          %s200 = scalar_lea.vmem %s2, %s199
        $region32: #{token_embedding.1} parent=19 // pred_fallthru
          _
      $region20: #{token_embedding.1} parent=5 // pred_fallthru
        _
      %p201 = scmp.le.s32.totalorder 1, %s13
      %p202 = scmp.lt.s32.totalorder %s13, 3
      %p203 = pnand %p201, %p202
      %p204 = pneg %p203
      // Predicated region
      $region33: #{token_embedding.1} parent=5 // pred_check
        _
      $region34: #{token_embedding.1} parent=5 // pred_check_branch
        %206 = sbr.rel (%p203) target = $region36
      $region35: #{token_embedding.1} parent=5 // pred_region
        %s207 = ssub.s32 %s13, 1
        %s208 = smul.u32 2, %s23
        %p209 = scmp.lt.s32.totalorder %s22, 1
        %s210 = scalar_select %p209, %s22, 1
        %p211 = scmp.lt.s32.totalorder %s208, 1
        %s212 = scalar_select %p211, %s208, 1
        %s213 = smul.addr %s210, 2
        %s214 = sadd.s32 %s212, %s213
        %s215 = smul.addr %s214, 8
        %s216 = scalar_lea.vmem %s0, %s215
        %p217 = pneg %p53
        %p218 = pneg %p50
        %p219 = scmp.lt.s32.totalorder %s22, 1
        %s220 = scalar_select %p219, %s22, 1
        %s221 = scalar_lea.vmem %s1, %s220
        %p222 = pneg %p79
        %p223 = pneg %p76
        %p224 = scmp.lt.s32.totalorder %s22, 1
        %s225 = scalar_select %p224, %s22, 1
        %s226 = scalar_lea.vmem %s2, %s225
        %p227 = pneg %p105
        %p228 = pneg %p102
        %p229 = pneg %p126
        %p230 = pneg %p123
        %p231 = pneg %p154
        %p232 = pneg %p151
        %s233 = sand.u32 %s141, 1
        %s234 = scalar_lea.sflag [#allocation3], %s233
        %s235 = sand.u32 %s141, 1
        %s236 = smul.addr %s235, 16
        %s237 = scalar_lea.vmem [#allocation2], %s236
        %s238 = smul.u32 2, %s23
        %p239 = scmp.lt.s32.totalorder %s22, 1
        %s240 = scalar_select %p239, %s22, 1
        %p241 = scmp.lt.s32.totalorder %s238, 1
        %s242 = scalar_select %p241, %s238, 1
        %s243 = smul.addr %s240, 2
        %s244 = sadd.s32 %s242, %s243
        %s245 = smul.addr %s244, 8
        %s246 = scalar_lea.vmem %s0, %s245
        %s247 = smul.u32 2, %s23
        %p248 = scmp.lt.s32.totalorder %s22, 1
        %s249 = scalar_select %p248, %s22, 1
        %s250 = scalar_lea.vmem %s1, %s249
        %p251 = scmp.lt.s32.totalorder %s22, 1
        %s252 = scalar_select %p251, %s22, 1
        %s253 = scalar_lea.vmem %s2, %s252
        %s254 = smul.u32 2, %s23
        %v255 = vld [vmem:[%s246] sm:$0xff]
        %v256 = vld [vmem:[%s246 + $0x8] sm:$0xff]
        %s257 = scalar_lea.vmem %s250, %s23
        %v258 = vld [vmem:[%s257] sm:$0x1]
        %s259 = scalar_lea.vmem %s253, %s23
        %v260 = vld [vmem:[%s259] sm:$0x1]
        %v261 = vlaneseq
        %v262 = vshrl.u32 %v261, 7
        %v263 = vadd.s32 %v262, 8
        %vm264 = vcmp.eq.s32.totalorder %v262, 0
        %vm265 = vcmp.eq.s32.totalorder %v263, 0
        %v266 = vrot.slane %v255, 7
        %v267 = vrot.slane %v256, 7
        %vm268 = vcmp.lt.s32.totalorder %v262, 1
        %v269 = vsel %vm268, %v266, %v267
        %v270 = vsel %vm268, %v267, %v266
        %v272 = vperm.slane %v258, 0
        %v274 = vsel %vm264, %v272, %v270
        %v275 = vsel %vm265, %v272, %v269
        %vm276 = vcmp.eq.s32.totalorder %v262, 15
        %vm277 = vcmp.eq.s32.totalorder %v263, 15
        %v278 = vrot.slane %v255, 1
        %v279 = vrot.slane %v256, 1
        %vm280 = vcmp.lt.s32.totalorder %v262, 7
        %v281 = vsel %vm280, %v278, %v279
        %v282 = vsel %vm280, %v279, %v278
        %v284 = vperm.slane %v260, 0
        %v286 = vsel %vm276, %v284, %v281
        %v287 = vsel %vm277, %v284, %v282
        %290 = vrot.lane.b32.xlu0 %v255, 4
        %v291 = vpop.permute.xlu0 %290
        %292 = vrot.lane.b32.xlu0 %v256, 4
        %v293 = vpop.permute.xlu0 %292
        %298 = vrot.lane.b32.xlu0 %v286, 8
        %v299 = vpop.permute.xlu0 %298
        %300 = vrot.lane.b32.xlu0 %v287, 8
        %v301 = vpop.permute.xlu0 %300
        %vm304 = vcmask 31744
        %v305 = vsel %vm304, %v274, %v291
        %v306 = vsel %vm304, %v275, %v293
        %vm307 = vcmask 64512
        %v308 = vsel %vm307, %v305, %v299
        %v309 = vsel %vm307, %v306, %v301
        %v310 = vld [vmem:[%s3] sm:$0xff]
        %v311 = vld [vmem:[%s3 + $0x8] sm:$0xf]
        %vm312 = vcmask 97280
        %v314 = vsel %vm312, %v308, 0
        %v317 = vsel %vm312, %v309, 0
        %vm319 = vcmask 1043456
        %v321 = vsel %vm319, %v311, 0
        %323 = vmatpush.msra.mxu0 0.0
        %324 = vmatpush.msra.mxu0 0.0
        %325 = vmatpush.msra.mxu0 0.0
        %326 = vmatpush.msra.mxu0 0.0
        %327 = vmatpush.msra.mxu0 0.0
        %328 = vmatpush.msra.mxu0 0.0
        %329 = vmatpush.msra.mxu0 0.0
        %330 = vmatpush.msra.mxu0 0.0
        %331 = vmatpush.msra.mxu0 0.0
        %332 = vmatpush.msra.mxu0 0.0
        %333 = vmatpush.msra.mxu0 0.0
        %334 = vmatpush.msra.mxu0 0.0
        %335 = vmatpush.msra.mxu0 0.0
        %336 = vmatpush.msra.mxu0 0.0
        %337 = vmatpush.msra.mxu0 %v321
        %338 = vmatpush.msra.mxu0 %v310
        %339 = vmatmul.f32.gmra.mxu0 %v314
        %v340 = vpop.f32.mrf.mxu0
        %v341 = vadd.f32 0.0, %v340
        %342 = vmatmul.f32.gmra.mxu0 %v317
        %v343 = vpop.f32.mrf.mxu0
        %v344 = vadd.f32 0.0, %v343
        %345 = vdwg.mxu0
        %vm346 = vcmask 261120
        %347 = vst.msk [vmem:[%s237] sm:$0xff] %vm346, %v341
        %348 = vst.msk [vmem:[%s237 + $0x8] sm:$0xff] %vm346, %v344
        %s349 = sand.u32 %s141, 1
        %s350 = scalar_lea.sflag [#allocation3], %s349
        %s351 = sand.u32 %s141, 1
        %s352 = smul.addr %s351, 16
        %s353 = scalar_lea.vmem [#allocation2], %s352
        // Predicated region
        $region37: #{token_embedding.1} parent=35 // pred_check
          %p354 = pneg %p151
        $region38: #{token_embedding.1} parent=35 // pred_check_branch
          %356 = sbr.rel (%p354) target = $region40
        $region39: #{token_embedding.1} parent=35 // pred_region
          %s357 = smul.u32 2, %s23
          %359 = vsyncadd %s350, 0
          %s360 = smul.addr %s22, 2
          %s361 = sadd.s32 %s357, %s360
          %s362 = smul.addr %s361, 8
          %s363 = scalar_lea.hbm %s4, %s362
          %s364 = sshll.u32 %s353, 4
          %s365 = int_to_ptr.vmem [resolvable:$true] %s364
          %s366 = sshll.u32 %s363, 4
          %s367 = int_to_ptr.hbm [resolvable:$true] %s366
          %372 = dma.vmem_to_hbm [thread:$0]  %s365, 256, %s367, %s350, 128, 128, 8
        $region40: #{token_embedding.1} parent=35 // pred_fallthru
          _
      $region36: #{token_embedding.1} parent=5 // pred_fallthru
        _
      %p373 = scmp.le.s32.totalorder 2, %s13
      // Predicated region
      $region41: #{token_embedding.1} parent=5 // pred_check
        %p374 = pneg %p373
      $region42: #{token_embedding.1} parent=5 // pred_check_branch
        %376 = sbr.rel (%p374) target = $region44
      $region43: #{token_embedding.1} parent=5 // pred_region
        %s377 = ssub.s32 %s13, 2
        // Predicated region
        $region45: #{token_embedding.1} parent=43 // pred_check
          %p378 = pneg %p157
        $region46: #{token_embedding.1} parent=43 // pred_check_branch
          %380 = sbr.rel (%p378) target = $region48
        $region47: #{token_embedding.1} parent=43 // pred_region
          %s381 = sand.u32 %s142, 1
          %s382 = scalar_lea.sflag [#allocation3], %s381
          %s383 = sand.u32 %s142, 1
          %s384 = smul.addr %s383, 16
          %s385 = scalar_lea.vmem [#allocation2], %s384
          %387 = dma.done %s382, 256
        $region48: #{token_embedding.1} parent=43 // pred_fallthru
          _
      $region44: #{token_embedding.1} parent=5 // pred_fallthru
        _
    $region6: #{token_embedding.1} parent=1 // loop_footer
      %s17 = sadd.s32 1, %s13
    $region7: #{token_embedding.1} parent=1 // loop_footer_branch
      %12 = sbr.rel target = $region3
    $region8: #{token_embedding.1} parent=1 // loop_exit
      _
    %388 = vsyncpa [#allocation3], 1
    %s389 = scalar_lea.sflag [#allocation3], 1
    %390 = vsyncpa %s389, 1

</llo_original>
